<compile_context>
chip_gen: v6e
topology: v6e:2x2x1
jax: 0.10.0
libtpu: 0.0.40
codegen_flags: <defaults>
</compile_context>

<pallas_src>
import functools

import jax
import jax.numpy as jnp
from jax.experimental import pallas as pl
from jax.experimental.pallas import tpu as pltpu


def _vmem_capacity_bytes():
    """Best-effort trace-time VMEM capacity query with a conservative default."""
    try:
        info = pltpu.get_tpu_info()
        for attr in ("vmem_capacity_bytes", "vmem_bytes", "vmem_size_bytes"):
            v = getattr(info, attr, None)
            if v:
                return int(v)
    except Exception:
        pass
    return 64 << 20  # conservative default (v7x per-TensorCore VMEM)


def _margin_loss_kernel(x_ref, out_ref, *, m_minus, tile_rows, rows_total,
                        mask_needed):
    """Per-tile partial sum of relu(a - m_minus)^2 over a lane-dense tile."""
    x = x_ref[...].astype(jnp.float32)            # [tile_rows, 128], f32 math
    neg = jnp.maximum(0.0, x - m_minus)
    val = neg * neg

    def write_partial(v):
        partial = jnp.sum(v)                      # one f32 scalar per tile
        r = jax.lax.broadcasted_iota(jnp.int32, (8, 128), 0)
        c = jax.lax.broadcasted_iota(jnp.int32, (8, 128), 1)
        out_ref[...] = jnp.where((r == 0) & (c == 0), partial, 0.0)

    if mask_needed:
        # Only the last grid step can see rows past the end of the [R, 128]
        # slab (their contents are undefined) -> mask them, gated by pl.when
        # so full tiles execute no masking ops at all.
        i = pl.program_id(0)
        is_last = i == pl.num_programs(0) - 1

        @pl.when(jnp.logical_not(is_last))
        def _():
            write_partial(val)

        @pl.when(is_last)
        def _():
            rows = jax.lax.broadcasted_iota(jnp.int32, val.shape, 0)
            limit = rows_total - i * tile_rows
            write_partial(jnp.where(rows < limit, val, 0.0))
    else:
        write_partial(val)


def margin_loss(class_caps_activations, targets, *,
                batch_averaged=True, margin_loss_lambda=0.5,
                m_plus=0.9, m_minus=0.1, tile_rows=None):
    """Pallas implementation of MarginLoss.forward.

    class_caps_activations: [b, B] float array (f32 or bf16).
    targets: [b, B] one-hot tensor or [b] int labels.
    Returns a scalar float32 loss.
    """
    b, _num_classes = class_caps_activations.shape
    dtype = class_caps_activations.dtype
    itemsize = jnp.dtype(dtype).itemsize

    # ---- targets -> int labels, wrapper-side target-class correction -------
    if targets.ndim == 1:
        labels = targets.astype(jnp.int32)
    else:
        # TODO(synk): soft / multi-hot 2-D targets are collapsed to argmax
        # labels; the reference module only specifies strict one-hot targets.
        labels = jnp.argmax(targets, axis=-1).astype(jnp.int32)
    # Gather in the HBM dtype, then upcast (same order as the in-kernel path).
    a_t = jnp.take_along_axis(class_caps_activations, labels[:, None],
                              axis=-1).astype(jnp.float32)        # [b, 1]
    pos_t = jnp.maximum(0.0, m_plus - a_t)
    neg_t = jnp.maximum(0.0, a_t - m_minus)
    correction = jnp.sum(pos_t * pos_t - margin_loss_lambda * (neg_t * neg_t))

    # ---- lane-dense [R, 128] view of the activations ------------------------
    n = b * _num_classes
    flat = class_caps_activations.reshape(-1)      # free row-major bitcast
    lane_pad = (-n) % 128
    if lane_pad:
        # Pad value m_minus - 1.0 contributes exactly zero loss even after
        # dtype rounding, so no extra masking is needed for padded lanes.
        # TODO(synk): this pad materializes one extra HBM copy; keep b*B a
        # multiple of 128 to make the lane-dense reshape a free bitcast.
        flat = jnp.pad(flat, (0, lane_pad), constant_values=m_minus - 1.0)
    x2d = flat.reshape(-1, 128)
    rows = x2d.shape[0]

    # ---- byte-budgeted, generation-aware row tile ---------------------------
    sub = {1: 32, 2: 16, 4: 8}.get(itemsize, 8)    # dtype-native sublane mult
    vmem_cap = _vmem_capacity_bytes()
    target_tile_bytes = (2 << 20) if vmem_cap <= (64 << 20) else (4 << 20)
    if tile_rows is not None:
        target_rows = int(tile_rows)
    else:
        target_rows = target_tile_bytes // (128 * itemsize)
    tb_max = max(sub, (target_rows // sub) * sub)

    if rows <= tb_max:
        tb = rows                                  # full-array block, no mask
        num_tiles = 1
        mask_needed = False
    else:
        tb = tb_max                                # sublane-aligned big tile
        num_tiles = pl.cdiv(rows, tb)
        mask_needed = (rows % tb) != 0

    # VMEM budget from the real (lane-dense) buffer sizes: double-buffered
    # input tiles + a few full-tile f32 temporaries + headroom.
    tile_in_bytes = tb * 128 * itemsize
    tile_f32_bytes = tb * 128 * 4
    vmem_need = 2 * tile_in_bytes + 4 * tile_f32_bytes + (2 << 20)
    vmem_limit = int(min(max(vmem_need, 16 << 20), (vmem_cap * 3) // 4))

    kernel = functools.partial(
        _margin_loss_kernel,
        m_minus=float(m_minus),
        tile_rows=tb,
        rows_total=rows,
        mask_needed=mask_needed,
    )

    partials = pl.pallas_call(
        kernel,
        out_shape=jax.ShapeDtypeStruct((num_tiles * 8, 128), jnp.float32),
        grid_spec=pltpu.PrefetchScalarGridSpec(
            num_scalar_prefetch=0,
            grid=(num_tiles,),
            in_specs=[pl.BlockSpec((tb, 128), lambda i: (i, 0))],
            out_specs=pl.BlockSpec((8, 128), lambda i: (i, 0)),
        ),
        compiler_params=pltpu.CompilerParams(
            dimension_semantics=("parallel",),     # per-tile partials -> v7x 2-TC
            vmem_limit_bytes=vmem_limit,
        ),
    )(x2d)

    total = margin_loss_lambda * jnp.sum(partials) + correction
    if batch_averaged:
        total = total / jnp.float32(b)
    return total


def _reference(class_caps_activations, targets_onehot, *,
               batch_averaged=True, margin_loss_lambda=0.5,
               m_plus=0.9, m_minus=0.1):
    t_k = targets_onehot.astype(jnp.float32)
    act = class_caps_activations.astype(jnp.float32)
    zeros = jnp.zeros_like(act)
    correct = t_k * jnp.maximum(zeros, m_plus - act) ** 2
    incorrect = (1.0 - t_k) * margin_loss_lambda * jnp.maximum(
        zeros, act - m_minus) ** 2
    loss = jnp.sum(correct + incorrect, axis=-1)
    return jnp.mean(loss) if batch_averaged else jnp.sum(loss)


if __name__ == "__main__":
    key = jax.random.PRNGKey(0)
    k1, k2, k3, k4, k5, k6 = jax.random.split(key, 6)

    # Case 1: small, lane-exact (b*B == 128 -> free reshape, single tile).
    b, B = 8, 16
    acts = jax.random.uniform(k1, (b, B), dtype=jnp.float32)
    labels = jax.random.randint(k2, (b,), 0, B)
    onehot = jax.nn.one_hot(labels, B, dtype=jnp.float32)

    out = jax.block_until_ready(margin_loss(acts, onehot))
    ref = _reference(acts, onehot)
    assert jnp.allclose(out, ref, rtol=1e-5, atol=1e-6), (out, ref)

    # Int-label path (forward's ndim==1 branch).
    out_lbl = jax.block_until_ready(margin_loss(acts, labels))
    assert jnp.allclose(out_lbl, ref, rtol=1e-5, atol=1e-6), (out_lbl, ref)

    # batch_averaged=False (sum over observations).
    out_sum = jax.block_until_ready(
        margin_loss(acts, labels, batch_averaged=False))
    ref_sum = _reference(acts, onehot, batch_averaged=False)
    assert jnp.allclose(out_sum, ref_sum, rtol=1e-5, atol=1e-6), (out_sum,
                                                                  ref_sum)

    # Case 2: lane pad (b*B % 128 != 0) + multi-tile grid + last-tile masking.
    b2, B2 = 100, 16
    acts2 = jax.random.uniform(k3, (b2, B2), dtype=jnp.float32)
    labels2 = jax.random.randint(k4, (b2,), 0, B2)
    onehot2 = jax.nn.one_hot(labels2, B2, dtype=jnp.float32)

    out2 = jax.block_until_ready(margin_loss(acts2, labels2, tile_rows=8))
    ref2 = _reference(acts2, onehot2)
    assert jnp.allclose(out2, ref2, rtol=1e-5, atol=1e-5), (out2, ref2)

    # Case 3: bf16 activations (upcast to f32 in-kernel and in the gather).
    b3, B3 = 32, 16
    acts3 = jax.random.uniform(k5, (b3, B3), dtype=jnp.float32).astype(
        jnp.bfloat16)
    labels3 = jax.random.randint(k6, (b3,), 0, B3)
    onehot3 = jax.nn.one_hot(labels3, B3, dtype=jnp.float32)

    out3 = jax.block_until_ready(margin_loss(acts3, labels3))
    ref3 = _reference(acts3, onehot3)   # reference also upcasts bf16 -> f32
    assert jnp.allclose(out3, ref3, rtol=1e-4, atol=1e-5), (out3, ref3)

    print("KERNEL_OK")
</pallas_src>

<mosaic_0001>
module attributes {stable_mosaic.version = 11 : i64} {
  func.func @_margin_loss_kernel(%arg0: i32, %arg1: memref<1x128xf32, #tpu.memory_space<vmem>>, %arg2: memref<8x128xf32, #tpu.memory_space<vmem>>) attributes {dimension_semantics = [#tpu.dimension_semantics<parallel>], iteration_bounds = array<i64: 1>, scalar_prefetch = 0 : i64, scratch_operands = 0 : i64, tpu.core_type = #tpu.core_type<tc>, window_params = [{transform_indices = @transform_0, window_bounds = array<i64: 1, 128>}, {transform_indices = @transform_1, window_bounds = array<i64: 8, 128>}]} {
    %c0 = arith.constant 0 : index
    %c0_0 = arith.constant 0 : index
    %0 = vector.load %arg1[%c0, %c0_0] : memref<1x128xf32, #tpu.memory_space<vmem>>, vector<1x128xf32>
    %cst = arith.constant 1.000000e-01 : f32
    %1 = vector.broadcast %cst : f32 to vector<1x128xf32>
    %2 = arith.subf %0, %1 : vector<1x128xf32>
    %cst_1 = arith.constant 0.000000e+00 : f32
    %3 = vector.broadcast %cst_1 : f32 to vector<1x128xf32>
    %4 = arith.maximumf %3, %2 : vector<1x128xf32>
    %5 = arith.mulf %4, %4 : vector<1x128xf32>
    %6 = vector.shape_cast %5 : vector<1x128xf32> to vector<1x1x128xf32>
    %cst_2 = arith.constant dense<0.000000e+00> : vector<1xf32>
    %7 = vector.multi_reduction <add>, %6, %cst_2 [1, 2] : vector<1x1x128xf32> to vector<1xf32>
    %8 = vector.shape_cast %7 : vector<1xf32> to vector<1x1x1xf32>
    %9 = vector.extract %8[0, 0, 0] : f32 from vector<1x1x1xf32>
    %10 = tpu.iota {dimensions = array<i32: 0>} : vector<8x128xi32>
    %11 = tpu.iota {dimensions = array<i32: 1>} : vector<8x128xi32>
    %c0_i32 = arith.constant 0 : i32
    %12 = vector.broadcast %c0_i32 : i32 to vector<8x128xi32>
    %13 = arith.cmpi eq, %10, %12 : vector<8x128xi32>
    %c0_i32_3 = arith.constant 0 : i32
    %14 = vector.broadcast %c0_i32_3 : i32 to vector<8x128xi32>
    %15 = arith.cmpi eq, %11, %14 : vector<8x128xi32>
    %16 = arith.andi %13, %15 : vector<8x128xi1>
    %cst_4 = arith.constant 0.000000e+00 : f32
    %17 = vector.broadcast %9 : f32 to vector<8x128xf32>
    %18 = vector.broadcast %cst_4 : f32 to vector<8x128xf32>
    %19 = arith.select %16, %17, %18 : vector<8x128xi1>, vector<8x128xf32>
    %c0_5 = arith.constant 0 : index
    %c0_6 = arith.constant 0 : index
    %20 = vector.load %arg2[%c0_5, %c0_6] : memref<8x128xf32, #tpu.memory_space<vmem>>, vector<8x128xf32>
    tpu.vector_store %arg2[%c0_5, %c0_6], %19 {strides = array<i32>} : memref<8x128xf32, #tpu.memory_space<vmem>>, vector<8x128xf32>,
    return
  }
  func.func @transform_0(%arg0: i32) -> (i32, i32) {
    %c0_i32 = arith.constant 0 : i32
    %c0_i32_0 = arith.constant 0 : i32
    return %arg0, %c0_i32 : i32, i32
  }
  func.func @transform_1(%arg0: i32) -> (i32, i32) {
    %c0_i32 = arith.constant 0 : i32
    %c0_i32_0 = arith.constant 0 : i32
    return %arg0, %c0_i32 : i32, i32
  }
}

</mosaic_0001>

<llo_original>
// kernel: tpu_custom_call.1
$region0: #{tpu_custom_call.1}
  #allocation0 [shape = 'u32[]', space=smem, size = 0x4, offset = 0x4, fixed_abs, tag = 'smem constant byte address 0x4 - core index']
  #allocation1 [shape = 'u32[144,128]{1,0:T(1,128)}', space=vmem, size = 0x12000, scoped, tag = 'internal scratch']
  %s0 = inlined_call_operand.hbm [shape: f32[1,128], index: 0, kind: input, shape index: {}]
  %s1 = inlined_call_operand.hbm [shape: f32[8,128], index: 1, kind: output, shape index: {}]
  %s2 = sld [smem:[#allocation0]]
  $region18: #{tpu_custom_call.1} parent=0
    _
  %s4 = ssub.s32 1, %s2
  %s5 = scalar_select 0, %s4, %s2
  $region1: #{tpu_custom_call.1} parent=0
    #allocation2 [shape = 'u8[512]{0}', space=vmem, size = 0x400, scoped, tag = 'input window, operand 0, single buffered']
    #allocation3 [shape = 's32[1]{0}', space=sflag, size = 0x4, scoped, tag = 'scoped memory for tpu_custom_call.1']
    #allocation4 [shape = 's32[1]{0}', space=sflag, size = 0x4, scoped, tag = 'scoped memory for tpu_custom_call.1']
    #allocation5 [shape = 'u8[4096]{0}', space=vmem, size = 0x1000, scoped, tag = 'output window, operand 0, single buffered']
    %6 = vsyncpa [#allocation3], 0
    %7 = vsyncpa [#allocation4], 0
    // Predicated region
    $region2: #{tpu_custom_call.1} parent=1 // pred_check
      _
    $region3: #{tpu_custom_call.1} parent=1 // pred_check_branch
      %9 = sbr.rel (0) target = $region5
    $region4: #{tpu_custom_call.1} parent=1 // pred_region
      %s11 = ssub.s32 16, 16
      %12 = vsyncadd [#allocation3], %s11
      %s14 = sshll.u32 [#allocation2], 4
      %s15 = int_to_ptr.vmem [resolvable:$true] %s14
      %17 = dma.hbm_to_vmem [thread:$0]  %s0, 16, %s15, [#allocation3]
    $region5: #{tpu_custom_call.1} parent=1 // pred_fallthru
      _
    // Predicated region
    $region6: #{tpu_custom_call.1} parent=1 // pred_check
      _
    $region7: #{tpu_custom_call.1} parent=1 // pred_check_branch
      %19 = sbr.rel (0) target = $region9
    $region8: #{tpu_custom_call.1} parent=1 // pred_region
      %20 = dma.done [#allocation3], 16
    $region9: #{tpu_custom_call.1} parent=1 // pred_fallthru
      _
    %v21 = vld [vmem:[#allocation2] sm:$0x1]
    %v22 = vsub.f32 %v21, 0.1
    %v23 = vmax.f32 %v22, 0.0
    %v24 = vmul.f32 %v23, %v23
    %vm25 = vcmask 1040384
    %v26 = vsel %vm25, %v24, 0.0
    %27 = vadd.xlane.f32.xlu0 %v26
    %v28 = vpop.xlane.xlu0 %27
    %v29 = vrot.slane %v28, 4
    %v30 = vadd.f32 %v28, %v29
    %v31 = vrot.slane %v30, 2
    %v32 = vadd.f32 %v30, %v31
    %v33 = vrot.slane %v32, 1
    %v34 = vadd.f32 %v32, %v33
    %s35 = vtos %v34
    %v36 = vlaneseq
    %v37 = vshrl.u32 %v36, 7
    %v38 = vlaneseq
    %v39 = vand.u32 %v38, 127
    %vm40 = vcmp.eq.s32.totalorder %v37, 0
    %vm41 = vcmp.eq.s32.totalorder %v39, 0
    %vm42 = vmand %vm40, %vm41
    %v43 = vstv %s35
    %v44 = vsel %vm42, %v43, 0.0
    %45 = vst [vmem:[#allocation5] sm:$0xff] %v44
    // Predicated region
    $region10: #{tpu_custom_call.1} parent=1 // pred_check
      _
    $region11: #{tpu_custom_call.1} parent=1 // pred_check_branch
      %47 = sbr.rel (0) target = $region13
    $region12: #{tpu_custom_call.1} parent=1 // pred_region
      %s49 = ssub.s32 128, 128
      %50 = vsyncadd [#allocation4], %s49
      %s52 = sshll.u32 [#allocation5], 4
      %s53 = int_to_ptr.vmem [resolvable:$true] %s52
      %55 = dma.vmem_to_hbm [thread:$0]  %s53, 128, %s1, [#allocation4]
    $region13: #{tpu_custom_call.1} parent=1 // pred_fallthru
      _
    // Predicated region
    $region14: #{tpu_custom_call.1} parent=1 // pred_check
      _
    $region15: #{tpu_custom_call.1} parent=1 // pred_check_branch
      %57 = sbr.rel (0) target = $region17
    $region16: #{tpu_custom_call.1} parent=1 // pred_region
      %58 = dma.done [#allocation4], 128
    $region17: #{tpu_custom_call.1} parent=1 // pred_fallthru
      _
    %59 = vsyncpa [#allocation3], 1
    %60 = vsyncpa [#allocation4], 1

</llo_original>
